<compile_context>
chip_gen: v7x
topology: tpu7x:2x2x1
jax: 0.10.0
libtpu: 0.0.40
codegen_flags: <defaults>
</compile_context>

<pallas_src>
import functools
import math

import jax
import jax.numpy as jnp
from jax import lax
from jax.experimental import pallas as pl
from jax.experimental.pallas import tpu as pltpu


_NEG_BIG = -1e30  # finite stand-in for -inf: fully-masked rows stay NaN-free


# ---------------------------------------------------------------------------
# Generation-aware defaults
# ---------------------------------------------------------------------------

@functools.lru_cache(maxsize=1)
def _generation_defaults():
    """(tq_cap, vmem_limit_bytes) sized to the current TPU generation."""
    phys = 64 * 1024 * 1024                       # conservative: assume v7x
    try:
        phys = int(pltpu.get_tpu_info().vmem_capacity_bytes)
    except Exception:
        pass
    # Leave headroom for compiler scratch / softmax temporaries (~40 MiB on v7x,
    # 80 MiB on the 128 MiB parts).
    vmem_limit = int(min((phys * 5) // 8, 96 * 1024 * 1024))
    tq_cap = 128
    if phys >= (96 << 20):                        # 128 MiB parts (v5e/v5p/v6e)
        kind = ""
        try:
            kind = jax.devices()[0].device_kind.lower()
        except Exception:
            pass
        # 256-wide MXU parts (v6e+) benefit from 256-row query tiles; v5e's
        # 4x128^2 MXU is already saturated at 128.
        if "v5" not in kind:
            tq_cap = 256
    return tq_cap, vmem_limit


def _pick_tile(total, cap, unit):
    """Largest block <= cap that is a multiple of `unit` and divides `total`;
    `total` itself if total <= cap (full-extent block); None if no clean divisor."""
    if total <= cap:
        return total
    t = cap - cap % unit
    while t >= unit:
        if total % t == 0:
            return t
        t -= unit
    return None


# ---------------------------------------------------------------------------
# Kernels: weights-returning path (full Sk per step)
# ---------------------------------------------------------------------------

def _softmax_probs(q, k, mask_fn, inv_scale):
    # q: (TQ, D), k: (Sk, D) in native dtype -> MXU with f32 accumulation.
    qs = q * jnp.asarray(inv_scale, dtype=q.dtype)            # fold 1/sqrt(d) into Q
    scores = lax.dot_general(qs, k, (((1,), (1,)), ((), ())),
                             preferred_element_type=jnp.float32)   # (TQ, Sk) f32
    scores = mask_fn(scores)
    m = jnp.max(scores, axis=-1, keepdims=True)
    e = jnp.exp(scores - m)
    denom = jnp.sum(e, axis=-1, keepdims=True)
    return e * pl.reciprocal(denom, approx=True)              # (TQ, Sk) f32


def _emit(attn_f32, v, out_ref, attn_ref):
    # Cast once; reuse the low-precision probs for both P@V and the weights store.
    attn_lp = attn_f32.astype(v.dtype)
    out = lax.dot_general(attn_lp, v, (((1,), (0,)), ((), ())),
                          preferred_element_type=jnp.float32)
    attn_ref[...] = attn_lp if attn_ref.dtype == v.dtype else attn_f32.astype(attn_ref.dtype)
    out_ref[...] = out.astype(out_ref.dtype)


def _weights_kernel(q_ref, k_ref, v_ref, out_ref, attn_ref, *, inv_scale):
    attn = _softmax_probs(q_ref[...], k_ref[...], lambda s: s, inv_scale)
    _emit(attn, v_ref[...], out_ref, attn_ref)


def _weights_mask_kernel(q_ref, k_ref, v_ref, mask_ref, out_ref, attn_ref, *, inv_scale):
    keep = mask_ref[...] != 0                                 # (TQ|1, Sk|1) int8 tile
    attn = _softmax_probs(q_ref[...], k_ref[...],
                          lambda s: jnp.where(keep, s, jnp.float32(_NEG_BIG)),
                          inv_scale)
    _emit(attn, v_ref[...], out_ref, attn_ref)


# ---------------------------------------------------------------------------
# Kernels: flash path (online softmax over Sk tiles, no weights output)
# ---------------------------------------------------------------------------

def _flash_step(q, k, v, mask_fn, m_sc, l_sc, acc_sc, inv_scale):
    qs = q * jnp.asarray(inv_scale, dtype=q.dtype)
    s = lax.dot_general(qs, k, (((1,), (1,)), ((), ())),
                        preferred_element_type=jnp.float32)   # (TQ, TK) f32
    s = mask_fn(s)
    m_prev = m_sc[...]
    m_new = jnp.maximum(m_prev, jnp.max(s, axis=-1, keepdims=True))
    alpha = jnp.exp(m_prev - m_new)
    p = jnp.exp(s - m_new)
    l_sc[...] = alpha * l_sc[...] + jnp.sum(p, axis=-1, keepdims=True)
    acc_sc[...] = alpha * acc_sc[...] + lax.dot_general(
        p.astype(v.dtype), v, (((1,), (0,)), ((), ())),
        preferred_element_type=jnp.float32)
    m_sc[...] = m_new


def _flash_init(m_sc, l_sc, acc_sc):
    m_sc[...] = jnp.full_like(m_sc, -jnp.inf)
    l_sc[...] = jnp.zeros_like(l_sc)
    acc_sc[...] = jnp.zeros_like(acc_sc)


def _flash_finish(o_ref, l_sc, acc_sc):
    o_ref[...] = (acc_sc[...] * pl.reciprocal(l_sc[...], approx=True)).astype(o_ref.dtype)


def _flash_kernel(q_ref, k_ref, v_ref, o_ref, m_sc, l_sc, acc_sc, *, inv_scale):
    kv = pl.program_id(2)

    @pl.when(kv == 0)
    def _():
        _flash_init(m_sc, l_sc, acc_sc)

    _flash_step(q_ref[...], k_ref[...], v_ref[...], lambda s: s,
                m_sc, l_sc, acc_sc, inv_scale)

    @pl.when(kv == pl.num_programs(2) - 1)
    def _():
        _flash_finish(o_ref, l_sc, acc_sc)


def _flash_mask_kernel(q_ref, k_ref, v_ref, mask_ref, o_ref, m_sc, l_sc, acc_sc, *,
                       inv_scale):
    kv = pl.program_id(2)

    @pl.when(kv == 0)
    def _():
        _flash_init(m_sc, l_sc, acc_sc)

    keep = mask_ref[...] != 0
    _flash_step(q_ref[...], k_ref[...], v_ref[...],
                lambda s: jnp.where(keep, s, jnp.float32(_NEG_BIG)),
                m_sc, l_sc, acc_sc, inv_scale)

    @pl.when(kv == pl.num_programs(2) - 1)
    def _():
        _flash_finish(o_ref, l_sc, acc_sc)


# ---------------------------------------------------------------------------
# Wrapper
# ---------------------------------------------------------------------------

def scaled_dot_product_attention(query, key, value, mask=None, *,
                                 return_attn_weights=True, attn_dtype=None,
                                 tq_cap=None, tk_cap=512, vmem_limit_bytes=None):
    """Pallas implementation of ScaledDotProductAttention.forward.

    query/key/value: (B, Sq/Sk, D). mask: optional, broadcastable to (B, Sq, Sk),
    0 = masked out. Returns (output, attn_weights) when `return_attn_weights`,
    else (output, None) via a flash-style Sk-tiled kernel.
    """
    B, Sq, D = query.shape
    _, Sk, _ = key.shape
    inv_scale = 1.0 / math.sqrt(D)
    # TODO(synk): pad D to a multiple of 128 at the caller for full-lane stores /
    # full-depth MXU contractions; kept as-is here to avoid extra HBM copies at small D.

    gen_tq_cap, gen_vmem = _generation_defaults()
    if tq_cap is None:
        tq_cap = gen_tq_cap
    if vmem_limit_bytes is None:
        vmem_limit_bytes = gen_vmem

    out_dtype = query.dtype
    attn_dt = jnp.dtype(query.dtype if attn_dtype is None else attn_dtype)
    in_b = jnp.dtype(query.dtype).itemsize

    # --- mask: keep the user's shape, broadcast via the index_map (no HBM blow-up)
    if mask is not None:
        m3 = jnp.asarray(mask)
        if m3.ndim > 3:
            raise ValueError("mask must be broadcastable to (B, Sq, Sk)")
        m3 = jnp.reshape(m3, (1,) * (3 - m3.ndim) + m3.shape)
        Bm, Sqm, Skm = m3.shape
        if Bm not in (1, B) or Sqm not in (1, Sq) or Skm not in (1, Sk):
            raise ValueError(f"mask shape {jnp.shape(mask)} not broadcastable to {(B, Sq, Sk)}")
        # `mask == 0` drops; compare BEFORE the int8 cast so float masks in (0,1) are kept.
        m3 = (m3 != 0).astype(jnp.int8)
    else:
        Bm = Sqm = Skm = 1  # unused

    # --- query tile: fit the per-step working set into the per-generation VMEM budget
    if return_attn_weights:
        def _weights_ws(tq):
            kv_bytes = 2 * Sk * D * in_b            # K + V, single-buffered (Buffered(1))
            q_o = 2 * 2 * tq * D * in_b             # Q in + out tiles, double-buffered
            attn_t = 2 * tq * Sk * attn_dt.itemsize  # attn-weights tile, double-buffered
            temps = 3 * tq * Sk * 4                  # scores / exp / probs f32 temporaries
            return kv_bytes + q_o + attn_t + temps

        while tq_cap > 8 and _weights_ws(min(tq_cap, Sq)) > vmem_limit_bytes:
            tq_cap = max(8, tq_cap // 2)

    TQ = _pick_tile(Sq, tq_cap, 8)
    if TQ is None:                       # ragged Sq: fall back to padding
        TQ = tq_cap
    n_qt = pl.cdiv(Sq, TQ)
    Sq_pad = n_qt * TQ

    q_in = query
    if Sq_pad != Sq:
        q_in = jnp.pad(query, ((0, 0), (0, Sq_pad - Sq), (0, 0)))
        if mask is not None and Sqm == Sq:
            m3 = jnp.pad(m3, ((0, 0), (0, Sq_pad - Sq), (0, 0)), constant_values=1)
            Sqm = Sq_pad

    mask_b_tiled = mask is not None and Bm != 1
    mask_q_tiled = mask is not None and Sqm != 1
    mask_k_tiled = mask is not None and Skm != 1

    if return_attn_weights:
        # ---------------- weights path: full Sk per step ----------------
        in_specs = [
            pl.BlockSpec((None, TQ, D), lambda b, i: (b, i, 0)),
            # K/V only change at batch boundaries -> single buffer halves VMEM residency
            pl.BlockSpec((None, Sk, D), lambda b, i: (b, 0, 0),
                         pipeline_mode=pl.Buffered(1)),
            pl.BlockSpec((None, Sk, D), lambda b, i: (b, 0, 0),
                         pipeline_mode=pl.Buffered(1)),
        ]
        args = [q_in, key, value]
        if mask is not None:
            q_blk = TQ if mask_q_tiled else 1
            in_specs.append(pl.BlockSpec(
                (None, q_blk, Skm),
                lambda b, i, _bt=mask_b_tiled, _qt=mask_q_tiled:
                    ((b if _bt else 0), (i if _qt else 0), 0)))
            args.append(m3)
            kernel = functools.partial(_weights_mask_kernel, inv_scale=inv_scale)
        else:
            kernel = functools.partial(_weights_kernel, inv_scale=inv_scale)

        out, attn = pl.pallas_call(
            kernel,
            out_shape=(jax.ShapeDtypeStruct((B, Sq_pad, D), out_dtype),
                       jax.ShapeDtypeStruct((B, Sq_pad, Sk), attn_dt)),
            grid=(B, n_qt),
            in_specs=in_specs,
            out_specs=(pl.BlockSpec((None, TQ, D), lambda b, i: (b, i, 0)),
                       pl.BlockSpec((None, TQ, Sk), lambda b, i: (b, i, 0))),
            compiler_params=pltpu.CompilerParams(
                dimension_semantics=("parallel", "parallel"),
                vmem_limit_bytes=vmem_limit_bytes),
        )(*args)
        if Sq_pad != Sq:
            out = out[:, :Sq]
            attn = attn[:, :Sq]
        return out, attn

    # ---------------- flash path: Sk-tiled online softmax, no weights ----------------
    TK = _pick_tile(Sk, tk_cap, 128)
    if TK is None:                        # no clean 128-multiple divisor: full-Sk block
        TK = Sk
    n_kt = Sk // TK

    in_specs = [
        pl.BlockSpec((None, TQ, D), lambda b, i, k: (b, i, 0)),
        pl.BlockSpec((None, TK, D), lambda b, i, k: (b, k, 0)),
        pl.BlockSpec((None, TK, D), lambda b, i, k: (b, k, 0)),
    ]
    args = [q_in, key, value]
    if mask is not None:
        q_blk = TQ if mask_q_tiled else 1
        k_blk = TK if mask_k_tiled else 1
        in_specs.append(pl.BlockSpec(
            (None, q_blk, k_blk),
            lambda b, i, k, _bt=mask_b_tiled, _qt=mask_q_tiled, _kt=mask_k_tiled:
                ((b if _bt else 0), (i if _qt else 0), (k if _kt else 0))))
        args.append(m3)
        kernel = functools.partial(_flash_mask_kernel, inv_scale=inv_scale)
    else:
        kernel = functools.partial(_flash_kernel, inv_scale=inv_scale)

    out = pl.pallas_call(
        kernel,
        out_shape=jax.ShapeDtypeStruct((B, Sq_pad, D), out_dtype),
        grid=(B, n_qt, n_kt),
        in_specs=in_specs,
        out_specs=pl.BlockSpec((None, TQ, D), lambda b, i, k: (b, i, 0)),
        scratch_shapes=[pltpu.VMEM((TQ, 1), jnp.float32),   # running max
                        pltpu.VMEM((TQ, 1), jnp.float32),   # running denom
                        pltpu.VMEM((TQ, D), jnp.float32)],  # output accumulator
        compiler_params=pltpu.CompilerParams(
            dimension_semantics=("parallel", "parallel", "arbitrary"),
            vmem_limit_bytes=vmem_limit_bytes),
    )(*args)
    if Sq_pad != Sq:
        out = out[:, :Sq]
    return out, None


# ---------------------------------------------------------------------------
# Reference + self-test
# ---------------------------------------------------------------------------

def _reference(query, key, value, mask=None):
    scale = math.sqrt(query.shape[-1])
    scores = jnp.einsum("bqd,bkd->bqk", query, key) / scale
    if mask is not None:
        scores = jnp.where(mask == 0, -jnp.inf, scores)
    attn = jax.nn.softmax(scores, axis=-1)
    out = jnp.einsum("bqk,bkd->bqd", attn, value)
    return out, attn


if __name__ == "__main__":
    B, S, D = 2, 8, 32  # batch, seq, d_model
    root = jax.random.PRNGKey(0)
    kq, kk, kv, kextra = jax.random.split(root, 4)
    q = jax.random.normal(kq, (B, S, D), dtype=jnp.float32)
    k = jax.random.normal(kk, (B, S, D), dtype=jnp.float32)
    v = jax.random.normal(kv, (B, S, D), dtype=jnp.float32)

    # 1) no mask, weights returned (default: mirrors the PyTorch module)
    out, attn = scaled_dot_product_attention(q, k, v)
    jax.block_until_ready((out, attn))
    ref_out, ref_attn = _reference(q, k, v)
    assert jnp.allclose(out, ref_out, atol=5e-3, rtol=5e-3)
    assert jnp.allclose(attn, ref_attn, atol=5e-3, rtol=5e-3)

    # 2) 2-D causal mask, broadcast over batch via the BlockSpec index_map
    causal = jnp.tril(jnp.ones((S, S), dtype=jnp.int32))
    out_m, attn_m = scaled_dot_product_attention(q, k, v, mask=causal)
    jax.block_until_ready((out_m, attn_m))
    ref_out_m, ref_attn_m = _reference(q, k, v, mask=causal)
    assert jnp.allclose(out_m, ref_out_m, atol=5e-3, rtol=5e-3)
    assert jnp.allclose(attn_m, ref_attn_m, atol=5e-3, rtol=5e-3)

    # 3) flash (no-weights) path: multiple query and key tiles + key-padding mask
    Sq2, Sk2 = 16, 256
    kq2, kk2, kv2 = jax.random.split(kextra, 3)
    q2 = jax.random.normal(kq2, (B, Sq2, D), dtype=jnp.float32)
    k2 = jax.random.normal(kk2, (B, Sk2, D), dtype=jnp.float32)
    v2 = jax.random.normal(kv2, (B, Sk2, D), dtype=jnp.float32)
    pad_mask = jnp.broadcast_to(
        (jnp.arange(Sk2) < 200).astype(jnp.int32)[None, None, :], (B, 1, Sk2))
    out_f, attn_none = scaled_dot_product_attention(
        q2, k2, v2, mask=pad_mask, return_attn_weights=False, tq_cap=8, tk_cap=128)
    jax.block_until_ready(out_f)
    ref_out_f, _ = _reference(q2, k2, v2, mask=pad_mask)
    assert attn_none is None
    assert jnp.allclose(out_f, ref_out_f, atol=5e-3, rtol=5e-3)

    # 4) weights path with several query tiles (exercises Buffered(1) K/V revisit)
    out_w, attn_w = scaled_dot_product_attention(q2, k2, v2, mask=pad_mask, tq_cap=8)
    jax.block_until_ready((out_w, attn_w))
    ref_out_w, ref_attn_w = _reference(q2, k2, v2, mask=pad_mask)
    assert jnp.allclose(out_w, ref_out_w, atol=5e-3, rtol=5e-3)
    assert jnp.allclose(attn_w, ref_attn_w, atol=5e-3, rtol=5e-3)

    print("KERNEL_OK")
</pallas_src>

<mosaic_0001>
module attributes {stable_mosaic.version = 11 : i64} {
  func.func @_weights_kernel(%arg0: i32, %arg1: i32, %arg2: memref<1x8x32xf32, #tpu.memory_space<vmem>>, %arg3: memref<1x8x32xf32, #tpu.memory_space<vmem>>, %arg4: memref<1x8x32xf32, #tpu.memory_space<vmem>>, %arg5: memref<1x8x32xf32, #tpu.memory_space<vmem>>, %arg6: memref<1x8x8xf32, #tpu.memory_space<vmem>>) attributes {dimension_semantics = [#tpu.dimension_semantics<parallel>, #tpu.dimension_semantics<parallel>], iteration_bounds = array<i64: 2, 1>, scalar_prefetch = 0 : i64, scratch_operands = 0 : i64, tpu.core_type = #tpu.core_type<tc>, window_params = [{transform_indices = @transform_0, window_bounds = array<i64: 1, 8, 32>}, {pipeline_mode = #tpu.pipeline_mode<synchronous>, transform_indices = @transform_1, window_bounds = array<i64: 1, 8, 32>}, {pipeline_mode = #tpu.pipeline_mode<synchronous>, transform_indices = @transform_2, window_bounds = array<i64: 1, 8, 32>}, {transform_indices = @transform_3, window_bounds = array<i64: 1, 8, 32>}, {transform_indices = @transform_4, window_bounds = array<i64: 1, 8, 8>}]} {
    %c0 = arith.constant 0 : index
    %c0_0 = arith.constant 0 : index
    %c0_1 = arith.constant 0 : index
    %0 = vector.load %arg2[%c0, %c0_0, %c0_1] : memref<1x8x32xf32, #tpu.memory_space<vmem>>, vector<1x8x32xf32>
    %1 = vector.shape_cast %0 : vector<1x8x32xf32> to vector<8x32xf32>
    %c0_2 = arith.constant 0 : index
    %c0_3 = arith.constant 0 : index
    %c0_4 = arith.constant 0 : index
    %2 = vector.load %arg3[%c0_2, %c0_3, %c0_4] : memref<1x8x32xf32, #tpu.memory_space<vmem>>, vector<1x8x32xf32>
    %3 = vector.shape_cast %2 : vector<1x8x32xf32> to vector<8x32xf32>
    %cst = arith.constant 0.176776692 : f32
    %4 = vector.broadcast %cst : f32 to vector<8x32xf32>
    %5 = arith.mulf %1, %4 : vector<8x32xf32>
    %cst_5 = arith.constant dense<0.000000e+00> : vector<8x8xf32>
    %6 = tpu.matmul %5, %3, %cst_5 {dimension_numbers = #tpu.dot_dimension_numbers<[1], [1], [0], [0], [0, 0, 1, 0], [], []>} : vector<8x32xf32>, vector<8x32xf32>, vector<8x8xf32> -> vector<8x8xf32>
    %cst_6 = arith.constant dense<0xFF800000> : vector<8xf32>
    %7 = vector.multi_reduction <maximumf>, %6, %cst_6 [1] : vector<8x8xf32> to vector<8xf32>
    %8 = vector.shape_cast %7 : vector<8xf32> to vector<8x1xf32>
    %9 = vector.broadcast %8 : vector<8x1xf32> to vector<8x8xf32>
    %10 = arith.subf %6, %9 : vector<8x8xf32>
    %11 = math.exp %10 : vector<8x8xf32>
    %cst_7 = arith.constant dense<0.000000e+00> : vector<8xf32>
    %12 = vector.multi_reduction <add>, %11, %cst_7 [1] : vector<8x8xf32> to vector<8xf32>
    %13 = vector.shape_cast %12 : vector<8xf32> to vector<8x1xf32>
    %14 = tpu.reciprocal %13 {approx = true} : vector<8x1xf32> -> vector<8x1xf32>
    %15 = vector.broadcast %14 : vector<8x1xf32> to vector<8x8xf32>
    %16 = arith.mulf %11, %15 : vector<8x8xf32>
    %c0_8 = arith.constant 0 : index
    %c0_9 = arith.constant 0 : index
    %c0_10 = arith.constant 0 : index
    %17 = vector.load %arg4[%c0_8, %c0_9, %c0_10] : memref<1x8x32xf32, #tpu.memory_space<vmem>>, vector<1x8x32xf32>
    %18 = vector.shape_cast %17 : vector<1x8x32xf32> to vector<8x32xf32>
    %cst_11 = arith.constant dense<0.000000e+00> : vector<8x32xf32>
    %19 = tpu.matmul %16, %18, %cst_11 {dimension_numbers = #tpu.dot_dimension_numbers<[1], [0], [0], [1], [0, 0, 1, 1], [], []>} : vector<8x8xf32>, vector<8x32xf32>, vector<8x32xf32> -> vector<8x32xf32>
    %c0_12 = arith.constant 0 : index
    %c0_13 = arith.constant 0 : index
    %c0_14 = arith.constant 0 : index
    %20 = vector.load %arg6[%c0_12, %c0_13, %c0_14] : memref<1x8x8xf32, #tpu.memory_space<vmem>>, vector<1x8x8xf32>
    %21 = vector.shape_cast %20 : vector<1x8x8xf32> to vector<8x8xf32>
    %22 = vector.shape_cast %16 : vector<8x8xf32> to vector<1x8x8xf32>
    tpu.vector_store %arg6[%c0_12, %c0_13, %c0_14], %22 {strides = array<i32>} : memref<1x8x8xf32, #tpu.memory_space<vmem>>, vector<1x8x8xf32>,
    %c0_15 = arith.constant 0 : index
    %c0_16 = arith.constant 0 : index
    %c0_17 = arith.constant 0 : index
    %23 = vector.load %arg5[%c0_15, %c0_16, %c0_17] : memref<1x8x32xf32, #tpu.memory_space<vmem>>, vector<1x8x32xf32>
    %24 = vector.shape_cast %23 : vector<1x8x32xf32> to vector<8x32xf32>
    %25 = vector.shape_cast %19 : vector<8x32xf32> to vector<1x8x32xf32>
    tpu.vector_store %arg5[%c0_15, %c0_16, %c0_17], %25 {strides = array<i32>} : memref<1x8x32xf32, #tpu.memory_space<vmem>>, vector<1x8x32xf32>,
    return
  }
  func.func @transform_0(%arg0: i32, %arg1: i32) -> (i32, i32, i32) {
    %c0_i32 = arith.constant 0 : i32
    %c0_i32_0 = arith.constant 0 : i32
    return %arg0, %arg1, %c0_i32 : i32, i32, i32
  }
  func.func @transform_1(%arg0: i32, %arg1: i32) -> (i32, i32, i32) {
    %c0_i32 = arith.constant 0 : i32
    %c0_i32_0 = arith.constant 0 : i32
    %c0_i32_1 = arith.constant 0 : i32
    return %arg0, %c0_i32, %c0_i32_0 : i32, i32, i32
  }
  func.func @transform_2(%arg0: i32, %arg1: i32) -> (i32, i32, i32) {
    %c0_i32 = arith.constant 0 : i32
    %c0_i32_0 = arith.constant 0 : i32
    %c0_i32_1 = arith.constant 0 : i32
    return %arg0, %c0_i32, %c0_i32_0 : i32, i32, i32
  }
  func.func @transform_3(%arg0: i32, %arg1: i32) -> (i32, i32, i32) {
    %c0_i32 = arith.constant 0 : i32
    %c0_i32_0 = arith.constant 0 : i32
    return %arg0, %arg1, %c0_i32 : i32, i32, i32
  }
  func.func @transform_4(%arg0: i32, %arg1: i32) -> (i32, i32, i32) {
    %c0_i32 = arith.constant 0 : i32
    %c0_i32_0 = arith.constant 0 : i32
    return %arg0, %arg1, %c0_i32 : i32, i32, i32
  }
}

</mosaic_0001>

<llo_original>
// kernel: tpu_custom_call.1
$region0: #{tpu_custom_call.1}
  #allocation0 [shape = 'u32[]', space=smem, size = 0x4, offset = 0x4, fixed_abs, tag = 'smem constant byte address 0x4 - core index']
  #allocation1 [shape = 'u32[144,128]{1,0:T(1,128)}', space=vmem, size = 0x12000, scoped, tag = 'internal scratch']
  %s0 = inlined_call_operand.hbm [shape: f32[2,8,32], index: 0, kind: input, shape index: {}]
  %s1 = inlined_call_operand.hbm [shape: f32[2,8,32], index: 1, kind: input, shape index: {}]
  %s2 = inlined_call_operand.hbm [shape: f32[2,8,32], index: 2, kind: input, shape index: {}]
  %s3 = inlined_call_operand.hbm [shape: f32[2,8,32], index: 3, kind: output, shape index: {0}]
  %s4 = inlined_call_operand.hbm [shape: f32[2,8,8], index: 4, kind: output, shape index: {1}]
  %5 = xla_tuple %s3, %s4
  %s6 = sld [smem:[#allocation0]]
  $region65: #{tpu_custom_call.1} parent=0
    _
  %s8 = ssub.s32 1, %s6
  %s9 = scalar_select 0, %s8, %s6
  $region1: #{tpu_custom_call.1} parent=0
    #allocation2 [shape = 'u8[8192]{0}', space=vmem, size = 0x2000, scoped, tag = 'input window, operand 0']
    #allocation3 [shape = 's32[2]{0}', space=sflag, size = 0x8, scoped, tag = 'scoped memory for tpu_custom_call.1']
    #allocation4 [shape = 's32[2]{0}', space=sflag, size = 0x8, scoped, tag = 'scoped memory for tpu_custom_call.1']
    #allocation5 [shape = 'u8[4096]{0}', space=vmem, size = 0x1000, scoped, tag = 'input window, operand 1, single buffered']
    #allocation6 [shape = 's32[1]{0}', space=sflag, size = 0x4, scoped, tag = 'scoped memory for tpu_custom_call.1']
    #allocation7 [shape = 'u8[4096]{0}', space=vmem, size = 0x1000, scoped, tag = 'input window, operand 2, single buffered']
    #allocation8 [shape = 'u8[8192]{0}', space=vmem, size = 0x2000, scoped, tag = 'output window, operand 0']
    #allocation9 [shape = 'u8[8192]{0}', space=vmem, size = 0x2000, scoped, tag = 'output window, operand 1']
    #allocation10 [shape = 's32[2]{0}', space=sflag, size = 0x8, scoped, tag = 'scoped memory for tpu_custom_call.1']
    %10 = vsyncpa [#allocation3], 0
    %s11 = scalar_lea.sflag [#allocation3], 1
    %12 = vsyncpa %s11, 0
    %13 = vsyncpa [#allocation6], 0
    %14 = vsyncpa [#allocation4], 0
    %s15 = scalar_lea.sflag [#allocation4], 1
    %16 = vsyncpa %s15, 0
    %17 = vsyncpa [#allocation10], 0
    %s18 = scalar_lea.sflag [#allocation10], 1
    %19 = vsyncpa %s18, 0
    loop: start=0, step=1, limit=4
    $region2: #{tpu_custom_call.1} parent=1 // loop_pre_header
      _
    $region3: #{tpu_custom_call.1} parent=1 // loop_header
      %s21 = sphi 0, %s25
      %p22 = scmp.ge.s32.totalorder %s21, 4
      %s28 = sphi 0, %s40
      %s29 = sphi 0, %s36
      %s30 = sphi 0, %s28
      %s31 = sphi 0, %s29
      %s32 = sphi 0, %s30
      %s33 = sphi 0, %s31
      %s45 = sphi 0, %s47
      %s48 = sphi 0, %s45
      %s49 = sphi 0, %s48
      %s65 = sphi 0, %s49
      %s71 = sphi 0, %s73
      %s74 = sphi 0, %s71
      %s75 = sphi 0, %s74
      %s91 = sphi 0, %s75
      %s97 = sphi 0, %s99
      %s100 = sphi 0, %s97
      %s101 = sphi 0, %s100
      %s117 = sphi 0, %s101
      %s125 = sphi 0, %s127
      %s128 = sphi 0, %s125
      %s129 = sphi 0, %s128
      %s145 = sphi 0, %s129
      %s153 = sphi 0, %s155
      %s156 = sphi 0, %s153
      %s157 = sphi 0, %s156
      %s173 = sphi 0, %s157
    $region4: #{tpu_custom_call.1} parent=1 // loop_header_branch
      %24 = sbr.rel (%p22) target = $region8
    $region5: #{tpu_custom_call.1} parent=1 // loop_body
      %s26 = ssub.s32 %s21, 1
      %s27 = ssub.s32 %s21, 2
      %s34 = sadd.s32 1, %s29
      %p35 = scmp.ge.s32.totalorder %s34, 1
      %s36 = scalar_select %p35, 0, %s34
      %s37 = sadd.s32 1, %s28
      %s38 = scalar_select %p35, %s37, %s28
      %p39 = scmp.ge.s32.totalorder %s38, 2
      %s40 = scalar_select %p39, 0, %s38
      %s41 = ssub.s32 %s28, %s40
      %s42 = ssub.s32 %s29, %s36
      %s43 = sor.u32 %s41, %s42
      %p44 = scmp.eq.s32.totalorder %s43, 0
      %s46 = sadd.s32 %s45, 1
      %s47 = scalar_select %p44, %s45, %s46
      %p50 = pneg %p44
      %p51 = scmp.eq.s32.totalorder %s21, 1
      %p52 = por %p50, %p51
      %p53 = scmp.ne.s32.totalorder %s45, %s48
      %p54 = scmp.eq.s32.totalorder %s21, 0
      %p55 = por %p53, %p54
      %p56 = scmp.ne.s32.totalorder %s45, %s48
      %p57 = scmp.eq.s32.totalorder %s26, 1
      %p58 = por %p56, %p57
      %p59 = scmp.ne.s32.totalorder %s48, %s49
      %p60 = scmp.eq.s32.totalorder %s26, 0
      %p61 = por %p59, %p60
      %p62 = scmp.ne.s32.totalorder %s48, %s49
      %p63 = scmp.eq.s32.totalorder %s27, 1
      %p64 = por %p62, %p63
      %p66 = scmp.ne.s32.totalorder %s49, %s65
      %p67 = scmp.eq.s32.totalorder %s27, 0
      %p68 = por %p66, %p67
      %s69 = ssub.s32 %s28, %s40
      %p70 = scmp.eq.s32.totalorder %s69, 0
      %s72 = sadd.s32 %s71, 1
      %s73 = scalar_select %p70, %s71, %s72
      %p76 = pneg %p70
      %p77 = scmp.eq.s32.totalorder %s21, 1
      %p78 = por %p76, %p77
      %p79 = scmp.ne.s32.totalorder %s71, %s74
      %p80 = scmp.eq.s32.totalorder %s21, 0
      %p81 = por %p79, %p80
      %p82 = scmp.ne.s32.totalorder %s71, %s74
      %p83 = scmp.eq.s32.totalorder %s26, 1
      %p84 = por %p82, %p83
      %p85 = scmp.ne.s32.totalorder %s74, %s75
      %p86 = scmp.eq.s32.totalorder %s26, 0
      %p87 = por %p85, %p86
      %p88 = scmp.ne.s32.totalorder %s74, %s75
      %p89 = scmp.eq.s32.totalorder %s27, 1
      %p90 = por %p88, %p89
      %p92 = scmp.ne.s32.totalorder %s75, %s91
      %p93 = scmp.eq.s32.totalorder %s27, 0
      %p94 = por %p92, %p93
      %s95 = ssub.s32 %s28, %s40
      %p96 = scmp.eq.s32.totalorder %s95, 0
      %s98 = sadd.s32 %s97, 1
      %s99 = scalar_select %p96, %s97, %s98
      %p102 = pneg %p96
      %p103 = scmp.eq.s32.totalorder %s21, 1
      %p104 = por %p102, %p103
      %p105 = scmp.ne.s32.totalorder %s97, %s100
      %p106 = scmp.eq.s32.totalorder %s21, 0
      %p107 = por %p105, %p106
      %p108 = scmp.ne.s32.totalorder %s97, %s100
      %p109 = scmp.eq.s32.totalorder %s26, 1
      %p110 = por %p108, %p109
      %p111 = scmp.ne.s32.totalorder %s100, %s101
      %p112 = scmp.eq.s32.totalorder %s26, 0
      %p113 = por %p111, %p112
      %p114 = scmp.ne.s32.totalorder %s100, %s101
      %p115 = scmp.eq.s32.totalorder %s27, 1
      %p116 = por %p114, %p115
      %p118 = scmp.ne.s32.totalorder %s101, %s117
      %p119 = scmp.eq.s32.totalorder %s27, 0
      %p120 = por %p118, %p119
      %s121 = ssub.s32 %s28, %s40
      %s122 = ssub.s32 %s29, %s36
      %s123 = sor.u32 %s121, %s122
      %p124 = scmp.eq.s32.totalorder %s123, 0
      %s126 = sadd.s32 %s125, 1
      %s127 = scalar_select %p124, %s125, %s126
      %p130 = pneg %p124
      %p131 = scmp.eq.s32.totalorder %s21, 1
      %p132 = por %p130, %p131
      %p133 = scmp.ne.s32.totalorder %s125, %s128
      %p134 = scmp.eq.s32.totalorder %s21, 0
      %p135 = por %p133, %p134
      %p136 = scmp.ne.s32.totalorder %s125, %s128
      %p137 = scmp.eq.s32.totalorder %s26, 1
      %p138 = por %p136, %p137
      %p139 = scmp.ne.s32.totalorder %s128, %s129
      %p140 = scmp.eq.s32.totalorder %s26, 0
      %p141 = por %p139, %p140
      %p142 = scmp.ne.s32.totalorder %s128, %s129
      %p143 = scmp.eq.s32.totalorder %s27, 1
      %p144 = por %p142, %p143
      %p146 = scmp.ne.s32.totalorder %s129, %s145
      %p147 = scmp.eq.s32.totalorder %s27, 0
      %p148 = por %p146, %p147
      %s149 = ssub.s32 %s28, %s40
      %s150 = ssub.s32 %s29, %s36
      %s151 = sor.u32 %s149, %s150
      %p152 = scmp.eq.s32.totalorder %s151, 0
      %s154 = sadd.s32 %s153, 1
      %s155 = scalar_select %p152, %s153, %s154
      %p158 = pneg %p152
      %p159 = scmp.eq.s32.totalorder %s21, 1
      %p160 = por %p158, %p159
      %p161 = scmp.ne.s32.totalorder %s153, %s156
      %p162 = scmp.eq.s32.totalorder %s21, 0
      %p163 = por %p161, %p162
      %p164 = scmp.ne.s32.totalorder %s153, %s156
      %p165 = scmp.eq.s32.totalorder %s26, 1
      %p166 = por %p164, %p165
      %p167 = scmp.ne.s32.totalorder %s156, %s157
      %p168 = scmp.eq.s32.totalorder %s26, 0
      %p169 = por %p167, %p168
      %p170 = scmp.ne.s32.totalorder %s156, %s157
      %p171 = scmp.eq.s32.totalorder %s27, 1
      %p172 = por %p170, %p171
      %p174 = scmp.ne.s32.totalorder %s157, %s173
      %p175 = scmp.eq.s32.totalorder %s27, 0
      %p176 = por %p174, %p175
      %p177 = scmp.le.s32.totalorder 1, %s21
      %p178 = scmp.lt.s32.totalorder %s21, 3
      %p179 = pnand %p177, %p178
      %p180 = pneg %p179
      // Predicated region
      $region9: #{tpu_custom_call.1} parent=5 // pred_check
        _
      $region10: #{tpu_custom_call.1} parent=5 // pred_check_branch
        %182 = sbr.rel (%p179) target = $region12
      $region11: #{tpu_custom_call.1} parent=5 // pred_region
        %s183 = ssub.s32 %s21, 1
        // Predicated region
        $region13: #{tpu_custom_call.1} parent=11 // pred_check
          %p184 = pneg %p87
        $region14: #{tpu_custom_call.1} parent=11 // pred_check_branch
          %186 = sbr.rel (%p184) target = $region16
        $region15: #{tpu_custom_call.1} parent=11 // pred_region
          %s188 = ssub.s32 128, 128
          %189 = vsyncadd [#allocation6], %s188
          %s190 = smul.addr %s30, 128
          %s191 = scalar_lea.hbm %s1, %s190
          %s193 = sshll.u32 [#allocation5], 4
          %s194 = int_to_ptr.vmem [resolvable:$true] %s193
          %196 = dma.hbm_to_vmem [thread:$0]  %s191, 128, %s194, [#allocation6]
        $region16: #{tpu_custom_call.1} parent=11 // pred_fallthru
          _
        // Predicated region
        $region17: #{tpu_custom_call.1} parent=11 // pred_check
          %p197 = pneg %p113
        $region18: #{tpu_custom_call.1} parent=11 // pred_check_branch
          %199 = sbr.rel (%p197) target = $region20
        $region19: #{tpu_custom_call.1} parent=11 // pred_region
          %s201 = ssub.s32 128, 128
          %202 = vsyncadd [#allocation6], %s201
          %s203 = smul.addr %s30, 128
          %s204 = scalar_lea.hbm %s2, %s203
          %s206 = sshll.u32 [#allocation7], 4
          %s207 = int_to_ptr.vmem [resolvable:$true] %s206
          %209 = dma.hbm_to_vmem [thread:$0]  %s204, 128, %s207, [#allocation6]
        $region20: #{tpu_custom_call.1} parent=11 // pred_fallthru
          _
      $region12: #{tpu_custom_call.1} parent=5 // pred_fallthru
        _
      %p210 = scmp.lt.s32.totalorder %s21, 2
      // Predicated region
      $region21: #{tpu_custom_call.1} parent=5 // pred_check
        %p211 = pneg %p210
      $region22: #{tpu_custom_call.1} parent=5 // pred_check_branch
        %213 = sbr.rel (%p211) target = $region24
      $region23: #{tpu_custom_call.1} parent=5 // pred_region
        // Predicated region
        $region25: #{tpu_custom_call.1} parent=23 // pred_check
          %p214 = pneg %p55
        $region26: #{tpu_custom_call.1} parent=23 // pred_check_branch
          %216 = sbr.rel (%p214) target = $region28
        $region27: #{tpu_custom_call.1} parent=23 // pred_region
          %s217 = sand.u32 %s45, 1
          %s218 = scalar_lea.sflag [#allocation3], %s217
          %s219 = sand.u32 %s45, 1
          %s220 = smul.addr %s219, 8
          %s221 = scalar_lea.vmem [#allocation2], %s220
          %s223 = ssub.s32 128, 128
          %224 = vsyncadd %s218, %s223
          %s225 = sadd.s32 %s29, %s28
          %s226 = smul.addr %s225, 128
          %s227 = scalar_lea.hbm %s0, %s226
          %s229 = sshll.u32 %s221, 4
          %s230 = int_to_ptr.vmem [resolvable:$true] %s229
          %232 = dma.hbm_to_vmem [thread:$0]  %s227, 128, %s230, %s218
        $region28: #{tpu_custom_call.1} parent=23 // pred_fallthru
          _
      $region24: #{tpu_custom_call.1} parent=5 // pred_fallthru
        _
      %p233 = scmp.le.s32.totalorder 1, %s21
      %p234 = scmp.lt.s32.totalorder %s21, 3
      %p235 = pnand %p233, %p234
      %p236 = pneg %p235
      // Predicated region
      $region29: #{tpu_custom_call.1} parent=5 // pred_check
        _
      $region30: #{tpu_custom_call.1} parent=5 // pred_check_branch
        %238 = sbr.rel (%p235) target = $region32
      $region31: #{tpu_custom_call.1} parent=5 // pred_region
        %s239 = ssub.s32 %s21, 1
        %s240 = sand.u32 %s48, 1
        %s241 = scalar_lea.sflag [#allocation3], %s240
        %s242 = sand.u32 %s48, 1
        %s243 = smul.addr %s242, 8
        %s244 = scalar_lea.vmem [#allocation2], %s243
        // Predicated region
        $region33: #{tpu_custom_call.1} parent=31 // pred_check
          %p245 = pneg %p61
        $region34: #{tpu_custom_call.1} parent=31 // pred_check_branch
          %247 = sbr.rel (%p245) target = $region36
        $region35: #{tpu_custom_call.1} parent=31 // pred_region
          %248 = dma.done %s241, 128
        $region36: #{tpu_custom_call.1} parent=31 // pred_fallthru
          _
        // Predicated region
        $region37: #{tpu_custom_call.1} parent=31 // pred_check
          %p249 = pneg %p87
        $region38: #{tpu_custom_call.1} parent=31 // pred_check_branch
          %251 = sbr.rel (%p249) target = $region40
        $region39: #{tpu_custom_call.1} parent=31 // pred_region
          %252 = dma.done [#allocation6], 128
        $region40: #{tpu_custom_call.1} parent=31 // pred_fallthru
          _
        // Predicated region
        $region41: #{tpu_custom_call.1} parent=31 // pred_check
          %p253 = pneg %p113
        $region42: #{tpu_custom_call.1} parent=31 // pred_check_branch
          %255 = sbr.rel (%p253) target = $region44
        $region43: #{tpu_custom_call.1} parent=31 // pred_region
          %256 = dma.done [#allocation6], 128
        $region44: #{tpu_custom_call.1} parent=31 // pred_fallthru
          _
        %s257 = sand.u32 %s48, 1
        %s258 = scalar_lea.sflag [#allocation3], %s257
        %s259 = sand.u32 %s48, 1
        %s260 = smul.addr %s259, 8
        %s261 = scalar_lea.vmem [#allocation2], %s260
        %p262 = pneg %p61
        %p263 = pneg %p58
        %p264 = pneg %p87
        %p265 = pneg %p84
        %p266 = pneg %p113
        %p267 = pneg %p110
        %p268 = pneg %p141
        %p269 = pneg %p138
        %s270 = sand.u32 %s128, 1
        %s271 = scalar_lea.sflag [#allocation4], %s270
        %s272 = sand.u32 %s128, 1
        %s273 = smul.addr %s272, 8
        %s274 = scalar_lea.vmem [#allocation8], %s273
        %p275 = pneg %p169
        %p276 = pneg %p166
        %s277 = sand.u32 %s156, 1
        %s278 = scalar_lea.sflag [#allocation10], %s277
        %s279 = sand.u32 %s156, 1
        %s280 = smul.addr %s279, 8
        %s281 = scalar_lea.vmem [#allocation9], %s280
        %v282 = vld [vmem:[%s244] sm:$0xff]
        %v283 = vld [vmem:[#allocation5] sm:$0xff]
        %v284 = vmul.f32 %v282, 0.17677669
        %vm285 = vcmask 261120
        %v287 = vsel %vm285, %v284, 0
        %v290 = vsel %vm285, %v283, 0
        %292 = vmatprep.subr.mxu0 0.0
        %293 = vmatpush1.xpose.msra.mxu0 %v290
        %294 = vmatprep.subr.mxu0 0.0
        %295 = vmatpush1.xpose.msra.mxu0 0.0
        %296 = vmatprep.subr.mxu0 0.0
        %297 = vmatpush1.xpose.msra.mxu0 0.0
        %298 = vmatprep.subr.mxu0 0.0
        %299 = vmatpush1.xpose.msra.mxu0 0.0
        %300 = vmatprep.subr.mxu0 0.0
        %301 = vmatpush1.xpose.msra.mxu0 0.0
        %302 = vmatprep.subr.mxu0 0.0
        %303 = vmatpush1.xpose.msra.mxu0 0.0
        %304 = vmatprep.subr.mxu0 0.0
        %305 = vmatpush1.xpose.msra.mxu0 0.0
        %306 = vmatprep.subr.mxu0 0.0
        %307 = vmatpush1.xpose.msra.mxu0 0.0
        %308 = vmatprep.subr.mxu0 0.0
        %309 = vmatpush1.xpose.msra.mxu0 0.0
        %310 = vmatprep.subr.mxu0 0.0
        %311 = vmatpush1.xpose.msra.mxu0 0.0
        %312 = vmatprep.subr.mxu0 0.0
        %313 = vmatpush1.xpose.msra.mxu0 0.0
        %314 = vmatprep.subr.mxu0 0.0
        %315 = vmatpush1.xpose.msra.mxu0 0.0
        %316 = vmatprep.subr.mxu0 0.0
        %317 = vmatpush1.xpose.msra.mxu0 0.0
        %318 = vmatprep.subr.mxu0 0.0
        %319 = vmatpush1.xpose.msra.mxu0 0.0
        %320 = vmatprep.subr.mxu0 0.0
        %321 = vmatpush1.xpose.msra.mxu0 0.0
        %322 = vmatprep.subr.mxu0 0.0
        %323 = vmatpush1.xpose.msra.mxu0 0.0
        %324 = vmatprep.subr.mxu0 0.0
        %325 = vmatpush1.xpose.msra.mxu0 0.0
        %326 = vmatprep.subr.mxu0 0.0
        %327 = vmatpush1.xpose.msra.mxu0 0.0
        %328 = vmatprep.subr.mxu0 0.0
        %329 = vmatpush1.xpose.msra.mxu0 0.0
        %330 = vmatprep.subr.mxu0 0.0
        %331 = vmatpush1.xpose.msra.mxu0 0.0
        %332 = vmatprep.subr.mxu0 0.0
        %333 = vmatpush1.xpose.msra.mxu0 0.0
        %334 = vmatprep.subr.mxu0 0.0
        %335 = vmatpush1.xpose.msra.mxu0 0.0
        %336 = vmatprep.subr.mxu0 0.0
        %337 = vmatpush1.xpose.msra.mxu0 0.0
        %338 = vmatprep.subr.mxu0 0.0
        %339 = vmatpush1.xpose.msra.mxu0 0.0
        %340 = vmatprep.subr.mxu0 0.0
        %341 = vmatpush1.xpose.msra.mxu0 0.0
        %342 = vmatprep.subr.mxu0 0.0
        %343 = vmatpush1.xpose.msra.mxu0 0.0
        %344 = vmatprep.subr.mxu0 0.0
        %345 = vmatpush1.xpose.msra.mxu0 0.0
        %346 = vmatprep.subr.mxu0 0.0
        %347 = vmatpush1.xpose.msra.mxu0 0.0
        %348 = vmatprep.subr.mxu0 0.0
        %349 = vmatpush1.xpose.msra.mxu0 0.0
        %350 = vmatprep.subr.mxu0 0.0
        %351 = vmatpush1.xpose.msra.mxu0 0.0
        %352 = vmatprep.subr.mxu0 0.0
        %353 = vmatpush1.xpose.msra.mxu0 0.0
        %354 = vmatprep.subr.mxu0 0.0
        %355 = vmatpush1.xpose.msra.mxu0 0.0
        %356 = vmatprep.mubr.f32.mxu0 0.0
        %357 = vmatmul.mubr.f32.gmra.mrb[0].mxu0 %v287
        %v358 = vpop.f32.mrb[0].mxu0
        %v359 = vadd.f32 0.0, %v358
        %v360 = vpop.f32.mrb[0].mxu0
        %361 = vdwg.mxu0
        %vm362 = vcmask 64512
        %v363 = vsel %vm362, %v359, -inf
        %364 = vmax.xlane.f32.xlu0 %v363
        %v365 = vpop.xlane.xlu0 %364
        %v366 = vsub.f32 %v359, %v365
        %v367 = vmul.f32 %v366, 1.442695
        %v368 = vpow.pop %v367
        %v369 = vsel %vm362, %v368, 0.0
        %370 = vadd.xlane.f32.xlu0 %v369
        %v371 = vpop.xlane.xlu0 %370
        %v372 = vrcp.pop %v371
        %v373 = vmul.f32 %v368, %v372
        %v374 = vld [vmem:[#allocation7] sm:$0xff]
        %v376 = vsel %vm362, %v373, 0
        %378 = vmatprep.subr.mxu0 0.0
        %379 = vmatpush1.msra.mxu0 %v374
        %380 = vmatprep.subr.mxu0 0.0
        %381 = vmatpush1.msra.mxu0 0.0
        %382 = vmatprep.subr.mxu0 0.0
        %383 = vmatpush1.msra.mxu0 0.0
        %384 = vmatprep.subr.mxu0 0.0
        %385 = vmatpush1.msra.mxu0 0.0
        %386 = vmatprep.subr.mxu0 0.0
        %387 = vmatpush1.msra.mxu0 0.0
        %388 = vmatprep.subr.mxu0 0.0
        %389 = vmatpush1.msra.mxu0 0.0
        %390 = vmatprep.subr.mxu0 0.0
        %391 = vmatpush1.msra.mxu0 0.0
        %392 = vmatprep.subr.mxu0 0.0
        %393 = vmatpush1.msra.mxu0 0.0
        %394 = vmatprep.subr.mxu0 0.0
        %395 = vmatpush1.msra.mxu0 0.0
        %396 = vmatprep.subr.mxu0 0.0
        %397 = vmatpush1.msra.mxu0 0.0
        %398 = vmatprep.subr.mxu0 0.0
        %399 = vmatpush1.msra.mxu0 0.0
        %400 = vmatprep.subr.mxu0 0.0
        %401 = vmatpush1.msra.mxu0 0.0
        %402 = vmatprep.subr.mxu0 0.0
        %403 = vmatpush1.msra.mxu0 0.0
        %404 = vmatprep.subr.mxu0 0.0
        %405 = vmatpush1.msra.mxu0 0.0
        %406 = vmatprep.subr.mxu0 0.0
        %407 = vmatpush1.msra.mxu0 0.0
        %408 = vmatprep.subr.mxu0 0.0
        %409 = vmatpush1.msra.mxu0 0.0
        %410 = vmatprep.subr.mxu0 0.0
        %411 = vmatpush1.msra.mxu0 0.0
        %412 = vmatprep.subr.mxu0 0.0
        %413 = vmatpush1.msra.mxu0 0.0
        %414 = vmatprep.subr.mxu0 0.0
        %415 = vmatpush1.msra.mxu0 0.0
        %416 = vmatprep.subr.mxu0 0.0
        %417 = vmatpush1.msra.mxu0 0.0
        %418 = vmatprep.subr.mxu0 0.0
        %419 = vmatpush1.msra.mxu0 0.0
        %420 = vmatprep.subr.mxu0 0.0
        %421 = vmatpush1.msra.mxu0 0.0
        %422 = vmatprep.subr.mxu0 0.0
        %423 = vmatpush1.msra.mxu0 0.0
        %424 = vmatprep.subr.mxu0 0.0
        %425 = vmatpush1.msra.mxu0 0.0
        %426 = vmatprep.subr.mxu0 0.0
        %427 = vmatpush1.msra.mxu0 0.0
        %428 = vmatprep.subr.mxu0 0.0
        %429 = vmatpush1.msra.mxu0 0.0
        %430 = vmatprep.subr.mxu0 0.0
        %431 = vmatpush1.msra.mxu0 0.0
        %432 = vmatprep.subr.mxu0 0.0
        %433 = vmatpush1.msra.mxu0 0.0
        %434 = vmatprep.subr.mxu0 0.0
        %435 = vmatpush1.msra.mxu0 0.0
        %436 = vmatprep.subr.mxu0 0.0
        %437 = vmatpush1.msra.mxu0 0.0
        %438 = vmatprep.subr.mxu0 0.0
        %439 = vmatpush1.msra.mxu0 0.0
        %440 = vmatprep.subr.mxu0 0.0
        %441 = vmatpush1.msra.mxu0 0.0
        %442 = vmatprep.mubr.f32.mxu0 0.0
        %443 = vmatmul.mubr.f32.gmra.mrb[0].mxu0 %v376
        %v444 = vpop.f32.mrb[0].mxu0
        %v445 = vadd.f32 0.0, %v444
        %v446 = vpop.f32.mrb[0].mxu0
        %447 = vdwg.mxu0
        %448 = vst.msk [vmem:[%s281] sm:$0xff] %vm362, %v373
        %449 = vst.msk [vmem:[%s274] sm:$0xff] %vm285, %v445
        %s450 = sand.u32 %s128, 1
        %s451 = scalar_lea.sflag [#allocation4], %s450
        %s452 = sand.u32 %s128, 1
        %s453 = smul.addr %s452, 8
        %s454 = scalar_lea.vmem [#allocation8], %s453
        %s455 = sand.u32 %s156, 1
        %s456 = scalar_lea.sflag [#allocation10], %s455
        %s457 = sand.u32 %s156, 1
        %s458 = smul.addr %s457, 8
        %s459 = scalar_lea.vmem [#allocation9], %s458
        // Predicated region
        $region45: #{tpu_custom_call.1} parent=31 // pred_check
          %p460 = pneg %p138
        $region46: #{tpu_custom_call.1} parent=31 // pred_check_branch
          %462 = sbr.rel (%p460) target = $region48
        $region47: #{tpu_custom_call.1} parent=31 // pred_region
          %s464 = ssub.s32 128, 128
          %465 = vsyncadd %s451, %s464
          %s466 = sadd.s32 %s31, %s30
          %s467 = smul.addr %s466, 128
          %s468 = scalar_lea.hbm %s3, %s467
          %s470 = sshll.u32 %s454, 4
          %s471 = int_to_ptr.vmem [resolvable:$true] %s470
          %473 = dma.vmem_to_hbm [thread:$0]  %s471, 128, %s468, %s451
        $region48: #{tpu_custom_call.1} parent=31 // pred_fallthru
          _
        // Predicated region
        $region49: #{tpu_custom_call.1} parent=31 // pred_check
          %p474 = pneg %p166
        $region50: #{tpu_custom_call.1} parent=31 // pred_check_branch
          %476 = sbr.rel (%p474) target = $region52
        $region51: #{tpu_custom_call.1} parent=31 // pred_region
          %s478 = ssub.s32 128, 128
          %479 = vsyncadd %s456, %s478
          %s480 = sadd.s32 %s31, %s30
          %s481 = smul.addr %s480, 128
          %s482 = scalar_lea.hbm %s4, %s481
          %s484 = sshll.u32 %s459, 4
          %s485 = int_to_ptr.vmem [resolvable:$true] %s484
          %487 = dma.vmem_to_hbm [thread:$0]  %s485, 128, %s482, %s456
        $region52: #{tpu_custom_call.1} parent=31 // pred_fallthru
          _
      $region32: #{tpu_custom_call.1} parent=5 // pred_fallthru
        _
      %p488 = scmp.le.s32.totalorder 2, %s21
      // Predicated region
      $region53: #{tpu_custom_call.1} parent=5 // pred_check
        %p489 = pneg %p488
      $region54: #{tpu_custom_call.1} parent=5 // pred_check_branch
        %491 = sbr.rel (%p489) target = $region56
      $region55: #{tpu_custom_call.1} parent=5 // pred_region
        %s492 = ssub.s32 %s21, 2
        // Predicated region
        $region57: #{tpu_custom_call.1} parent=55 // pred_check
          %p493 = pneg %p144
        $region58: #{tpu_custom_call.1} parent=55 // pred_check_branch
          %495 = sbr.rel (%p493) target = $region60
        $region59: #{tpu_custom_call.1} parent=55 // pred_region
          %s496 = sand.u32 %s129, 1
          %s497 = scalar_lea.sflag [#allocation4], %s496
          %s498 = sand.u32 %s129, 1
          %s499 = smul.addr %s498, 8
          %s500 = scalar_lea.vmem [#allocation8], %s499
          %501 = dma.done %s497, 128
        $region60: #{tpu_custom_call.1} parent=55 // pred_fallthru
          _
        // Predicated region
        $region61: #{tpu_custom_call.1} parent=55 // pred_check
          %p502 = pneg %p172
        $region62: #{tpu_custom_call.1} parent=55 // pred_check_branch
          %504 = sbr.rel (%p502) target = $region64
        $region63: #{tpu_custom_call.1} parent=55 // pred_region
          %s505 = sand.u32 %s157, 1
          %s506 = scalar_lea.sflag [#allocation10], %s505
          %s507 = sand.u32 %s157, 1
          %s508 = smul.addr %s507, 8
          %s509 = scalar_lea.vmem [#allocation9], %s508
          %510 = dma.done %s506, 128
        $region64: #{tpu_custom_call.1} parent=55 // pred_fallthru
          _
      $region56: #{tpu_custom_call.1} parent=5 // pred_fallthru
        _
    $region6: #{tpu_custom_call.1} parent=1 // loop_footer
      %s25 = sadd.s32 1, %s21
    $region7: #{tpu_custom_call.1} parent=1 // loop_footer_branch
      %20 = sbr.rel target = $region3
    $region8: #{tpu_custom_call.1} parent=1 // loop_exit
      _
    %511 = vsyncpa [#allocation3], 1
    %s512 = scalar_lea.sflag [#allocation3], 1
    %513 = vsyncpa %s512, 1
    %514 = vsyncpa [#allocation6], 1
    %515 = vsyncpa [#allocation4], 1
    %s516 = scalar_lea.sflag [#allocation4], 1
    %517 = vsyncpa %s516, 1
    %518 = vsyncpa [#allocation10], 1
    %s519 = scalar_lea.sflag [#allocation10], 1
    %520 = vsyncpa %s519, 1

</llo_original>
